<compile_context>
chip_gen: v7x
topology: tpu7x:2x2x1
jax: 0.10.0
libtpu: 0.0.40
codegen_flags: <defaults>
</compile_context>

<pallas_src>
import jax
import jax.numpy as jnp
from jax.experimental import pallas as pl
from jax.experimental.pallas import tpu as pltpu


def _round_up(x, m):
    return (x + m - 1) // m * m


def _leaky_relu(v, slope=0.1):
    return jnp.where(v >= 0, v, slope * v)


def decoder_manifold_kernel(
    x_ref,                 # [tile, hidden_dim3]  float32
    wm_ref, bm_ref,        # linear_m, packed into lanes [out_dim, out_dim+m)  (f32)
    wf_ref, bf_ref,        # fused linear_m->linear (w: compute dtype, b: f32)
    w1_ref, b1_ref,        # linear_1 : hidden_dim3 -> hidden_dim2
    w2_ref, b2_ref,        # linear_2 : hidden_dim2 -> hidden_dim1
    w3_ref, b3_ref,        # linear_3, packed into lanes [0, out_dim)
    y_ref,                 # [tile, total_pad]  packed: out | z | zeros
):
    x32 = x_ref[...]                     # f32
    cdt = wf_ref.dtype                   # compute dtype for the hidden path
    x = x32.astype(cdt)

    # z term: stays f32 (tiny matmul, full precision for the raw projection).
    # wm_ref/bm_ref are zero outside the z lanes, so this term is exact packing.
    z_term = (jnp.dot(x32, wm_ref[...], preferred_element_type=jnp.float32)
              + bm_ref[...])

    # hidden3 = leaky_relu(linear(linear_m(x)))  -- exact algebraic fold
    h = _leaky_relu(
        jnp.dot(x, wf_ref[...], preferred_element_type=jnp.float32) + bf_ref[...])
    # hidden2 = leaky_relu(linear_1(hidden3))
    h = _leaky_relu(
        jnp.dot(h.astype(cdt), w1_ref[...], preferred_element_type=jnp.float32)
        + b1_ref[...])
    # hidden1 = leaky_relu(linear_2(hidden2))
    h = _leaky_relu(
        jnp.dot(h.astype(cdt), w2_ref[...], preferred_element_type=jnp.float32)
        + b2_ref[...])
    # output = leaky_relu(linear_3(hidden1))  -- w3/b3 are zero outside the out
    # lanes, so the pre-activation there is exactly 0 and leaky_relu(0) == 0.
    out_term = _leaky_relu(
        jnp.dot(h.astype(cdt), w3_ref[...], preferred_element_type=jnp.float32)
        + b3_ref[...])

    # Single lane-dense store: out in lanes [0, out_dim), z in the next m lanes.
    y_ref[...] = (out_term + z_term).astype(y_ref.dtype)


def decoder_manifold_forward(x, params, *, compute_dtype=jnp.bfloat16,
                             out_dtype=jnp.float32, batch_tile=None,
                             return_packed=False):
    """x: [B, hidden_dim3] float32.  params: dict of (weight [in,out], bias [1,out]).

    Returns (z [B, manifold_dim], out [B, output_dim]).  With return_packed=True,
    returns the raw packed buffer y [Bp, total_pad] where
      y[:, :output_dim]                               == out
      y[:, output_dim:output_dim+manifold_dim]        == z
    (remaining lanes / rows >= B are zero padding) -- use this to avoid the extra
    HBM pass of the slices when the consumer can fuse them.
    """
    f32 = jnp.float32
    B, hidden_dim3 = x.shape
    wm, bm = params["linear_m"]
    w0, b0 = params["linear"]
    w1, b1 = params["linear_1"]
    w2, b2 = params["linear_2"]
    w3, b3 = params["linear_3"]

    manifold_dim = wm.shape[1]
    output_dim = w3.shape[1]

    # --- exact fold of linear_m -> linear (no nonlinearity between them) ---
    hi = jax.lax.Precision.HIGHEST
    w_fused = jnp.dot(wm.astype(f32), w0.astype(f32), precision=hi)        # [h3, h3]
    b_fused = jnp.dot(bm.astype(f32), w0.astype(f32), precision=hi) + b0   # [1, h3]

    # --- pack z next to out in one lane-padded block ---
    total = output_dim + manifold_dim
    total_pad = _round_up(total, 128)
    w3_p = jnp.pad(w3.astype(f32), ((0, 0), (0, total_pad - output_dim)))
    b3_p = jnp.pad(b3.astype(f32), ((0, 0), (0, total_pad - output_dim)))
    wm_p = jnp.pad(wm.astype(f32), ((0, 0), (output_dim, total_pad - total)))
    bm_p = jnp.pad(bm.astype(f32), ((0, 0), (output_dim, total_pad - total)))

    # --- batch tiling ---
    if batch_tile is None:
        if B <= 128:
            batch_tile = _round_up(B, 16)              # tiny batch: one step
        elif B <= 4096:
            batch_tile = _round_up(pl.cdiv(B, 2), 16)  # >= 2 steps (both v7x TCs)
        else:
            batch_tile = 2048                          # amortize per-step overhead
    Bp = _round_up(B, batch_tile)
    xp = x.astype(f32)
    if Bp != B:
        xp = jnp.pad(xp, ((0, Bp - B), (0, 0)))

    cdt = compute_dtype
    args = (
        xp,
        wm_p, bm_p,                                # f32: z keeps full precision
        w_fused.astype(cdt), b_fused.astype(f32),
        w1.astype(cdt), b1.astype(f32),
        w2.astype(cdt), b2.astype(f32),
        w3_p.astype(cdt), b3_p,
    )

    x_spec = pl.BlockSpec((batch_tile, hidden_dim3), lambda i: (i, 0))

    def rep_spec(a):  # replicated full-array block (weights / biases)
        return pl.BlockSpec(a.shape, lambda i: (0, 0))

    in_specs = [x_spec] + [rep_spec(a) for a in args[1:]]
    out_spec = pl.BlockSpec((batch_tile, total_pad), lambda i: (i, 0))

    # v5e guard: only set an explicit VMEM limit if the double-buffered footprint
    # could exceed the 16 MiB default scoped limit on that generation.
    out_isize = jnp.dtype(out_dtype).itemsize
    x_tile_bytes = batch_tile * hidden_dim3 * 4
    y_tile_bytes = batch_tile * total_pad * out_isize
    w_bytes = sum(int(a.size) * a.dtype.itemsize for a in args[1:])
    vmem_need = 2 * (x_tile_bytes + y_tile_bytes + w_bytes) + (2 << 20)
    cp_kwargs = dict(dimension_semantics=("parallel",))
    if vmem_need > (16 << 20):
        cp_kwargs["vmem_limit_bytes"] = int(min(vmem_need, 48 << 20))

    y = pl.pallas_call(
        decoder_manifold_kernel,
        out_shape=jax.ShapeDtypeStruct((Bp, total_pad), out_dtype),
        grid=(Bp // batch_tile,),
        in_specs=in_specs,
        out_specs=out_spec,
        compiler_params=pltpu.CompilerParams(**cp_kwargs),
    )(*args)

    if return_packed:
        return y

    # NOTE: these slices are an extra pass over the outputs; perf-sensitive callers
    # should use return_packed=True (or keep this inside the consumer's jit).
    z = y[:B, output_dim:output_dim + manifold_dim]
    out = y[:B, :output_dim]
    return z, out


def init_params(key, manifold_dim, hidden_dim3, hidden_dim2, hidden_dim1, output_dim):
    """Deterministic synthetic init. Weights stored [in, out], biases [1, out]."""
    dims = [
        ("linear_m", hidden_dim3, manifold_dim),
        ("linear", manifold_dim, hidden_dim3),
        ("linear_1", hidden_dim3, hidden_dim2),
        ("linear_2", hidden_dim2, hidden_dim1),
        ("linear_3", hidden_dim1, output_dim),
    ]
    params = {}
    for name, fan_in, fan_out in dims:
        key, kw, kb = jax.random.split(key, 3)
        bound = 1.0 / jnp.sqrt(fan_in)  # mimics PyTorch nn.Linear default range
        w = jax.random.uniform(kw, (fan_in, fan_out), jnp.float32, -bound, bound)
        b = jax.random.uniform(kb, (1, fan_out), jnp.float32, -bound, bound)
        params[name] = (w, b)
    return params


def reference_forward(x, params):
    """Plain-JAX reference matching the PyTorch module semantics (f32, unfused)."""
    hi = jax.lax.Precision.HIGHEST

    def lin(a, w, b):
        return jnp.dot(a, w, precision=hi) + b

    def lrelu(v):
        return jnp.where(v >= 0, v, 0.1 * v)

    wm, bm = params["linear_m"]
    w0, b0 = params["linear"]
    w1, b1 = params["linear_1"]
    w2, b2 = params["linear_2"]
    w3, b3 = params["linear_3"]

    z = lin(x, wm, bm)
    h3 = lrelu(lin(z, w0, b0))
    h2 = lrelu(lin(h3, w1, b1))
    h1 = lrelu(lin(h2, w2, b2))
    out = lrelu(lin(h1, w3, b3))
    return z, out


if __name__ == "__main__":
    # Small shapes consistent with the module's forward:
    manifold_dim = 8
    hidden_dim3 = 32
    hidden_dim2 = 64
    hidden_dim1 = 48
    output_dim = 96
    batch = 16

    key = jax.random.PRNGKey(0)
    key, kx = jax.random.split(key)
    x = jax.random.normal(kx, (batch, hidden_dim3), jnp.float32)
    params = init_params(key, manifold_dim, hidden_dim3, hidden_dim2,
                         hidden_dim1, output_dim)

    z_gold, out_gold = reference_forward(x, params)

    # 1) f32-operand path: tight correctness check (fold + packing are exact).
    z32, out32 = decoder_manifold_forward(x, params, compute_dtype=jnp.float32)
    z32, out32 = jax.block_until_ready((z32, out32))
    assert z32.shape == (batch, manifold_dim)
    assert out32.shape == (batch, output_dim)
    assert jnp.allclose(z32, z_gold, atol=1e-4, rtol=1e-4)
    assert jnp.allclose(out32, out_gold, atol=1e-4, rtol=1e-4)

    # 2) default bf16 hidden path: z stays f32-accurate (f32 z matmul), out loose.
    zbf, outbf = decoder_manifold_forward(x, params)
    zbf, outbf = jax.block_until_ready((zbf, outbf))
    assert jnp.allclose(zbf, z_gold, atol=1e-3, rtol=1e-3)
    assert jnp.allclose(outbf, out_gold, atol=5e-2, rtol=5e-2)

    # 3) non-divisible batch goes through the zero-pad path.
    z_odd, out_odd = decoder_manifold_forward(x[:13], params, compute_dtype=jnp.float32)
    z_odd, out_odd = jax.block_until_ready((z_odd, out_odd))
    assert jnp.allclose(z_odd, z_gold[:13], atol=1e-4, rtol=1e-4)
    assert jnp.allclose(out_odd, out_gold[:13], atol=1e-4, rtol=1e-4)

    # 4) mid-size batch -> >= 2 "parallel" grid steps (exercises multi-tile path).
    key, kx2 = jax.random.split(key)
    x_big = jax.random.normal(kx2, (300, hidden_dim3), jnp.float32)
    zb_gold, ob_gold = reference_forward(x_big, params)
    zb, ob = decoder_manifold_forward(x_big, params, compute_dtype=jnp.float32)
    zb, ob = jax.block_until_ready((zb, ob))
    assert jnp.allclose(zb, zb_gold, atol=1e-4, rtol=1e-4)
    assert jnp.allclose(ob, ob_gold, atol=1e-4, rtol=1e-4)

    # 5) packed-output / bf16-output fast path: check the documented layout.
    y_packed = decoder_manifold_forward(x, params, out_dtype=jnp.bfloat16,
                                        return_packed=True)
    y_packed = jax.block_until_ready(y_packed)
    z_pk = y_packed[:batch, output_dim:output_dim + manifold_dim].astype(jnp.float32)
    o_pk = y_packed[:batch, :output_dim].astype(jnp.float32)
    assert jnp.allclose(z_pk, z_gold, atol=2e-2, rtol=2e-2)
    assert jnp.allclose(o_pk, out_gold, atol=5e-2, rtol=5e-2)

    print("KERNEL_OK")
</pallas_src>

<mosaic_0001>
module attributes {stable_mosaic.version = 11 : i64} {
  func.func @decoder_manifold_kernel(%arg0: i32, %arg1: memref<16x32xf32, #tpu.memory_space<vmem>>, %arg2: memref<32x128xf32, #tpu.memory_space<vmem>>, %arg3: memref<1x128xf32, #tpu.memory_space<vmem>>, %arg4: memref<32x32xf32, #tpu.memory_space<vmem>>, %arg5: memref<1x32xf32, #tpu.memory_space<vmem>>, %arg6: memref<32x64xf32, #tpu.memory_space<vmem>>, %arg7: memref<1x64xf32, #tpu.memory_space<vmem>>, %arg8: memref<64x48xf32, #tpu.memory_space<vmem>>, %arg9: memref<1x48xf32, #tpu.memory_space<vmem>>, %arg10: memref<48x128xf32, #tpu.memory_space<vmem>>, %arg11: memref<1x128xf32, #tpu.memory_space<vmem>>, %arg12: memref<16x128xf32, #tpu.memory_space<vmem>>) attributes {dimension_semantics = [#tpu.dimension_semantics<parallel>], iteration_bounds = array<i64: 1>, scalar_prefetch = 0 : i64, scratch_operands = 0 : i64, tpu.core_type = #tpu.core_type<tc>, window_params = [{transform_indices = @transform_0, window_bounds = array<i64: 16, 32>}, {pipeline_mode = #tpu.pipeline_mode<synchronous>, transform_indices = @transform_1, window_bounds = array<i64: 32, 128>}, {pipeline_mode = #tpu.pipeline_mode<synchronous>, transform_indices = @transform_2, window_bounds = array<i64: 1, 128>}, {pipeline_mode = #tpu.pipeline_mode<synchronous>, transform_indices = @transform_3, window_bounds = array<i64: 32, 32>}, {pipeline_mode = #tpu.pipeline_mode<synchronous>, transform_indices = @transform_4, window_bounds = array<i64: 1, 32>}, {pipeline_mode = #tpu.pipeline_mode<synchronous>, transform_indices = @transform_5, window_bounds = array<i64: 32, 64>}, {pipeline_mode = #tpu.pipeline_mode<synchronous>, transform_indices = @transform_6, window_bounds = array<i64: 1, 64>}, {pipeline_mode = #tpu.pipeline_mode<synchronous>, transform_indices = @transform_7, window_bounds = array<i64: 64, 48>}, {pipeline_mode = #tpu.pipeline_mode<synchronous>, transform_indices = @transform_8, window_bounds = array<i64: 1, 48>}, {pipeline_mode = #tpu.pipeline_mode<synchronous>, transform_indices = @transform_9, window_bounds = array<i64: 48, 128>}, {pipeline_mode = #tpu.pipeline_mode<synchronous>, transform_indices = @transform_10, window_bounds = array<i64: 1, 128>}, {transform_indices = @transform_11, window_bounds = array<i64: 16, 128>}]} {
    %c0 = arith.constant 0 : index
    %c0_0 = arith.constant 0 : index
    %0 = vector.load %arg1[%c0, %c0_0] : memref<16x32xf32, #tpu.memory_space<vmem>>, vector<16x32xf32>
    %c0_1 = arith.constant 0 : index
    %c0_2 = arith.constant 0 : index
    %1 = vector.load %arg2[%c0_1, %c0_2] : memref<32x128xf32, #tpu.memory_space<vmem>>, vector<32x128xf32>
    %cst = arith.constant dense<0.000000e+00> : vector<16x128xf32>
    %2 = tpu.matmul %0, %1, %cst {dimension_numbers = #tpu.dot_dimension_numbers<[1], [0], [0], [1], [0, 0, 1, 1], [], []>} : vector<16x32xf32>, vector<32x128xf32>, vector<16x128xf32> -> vector<16x128xf32>
    %c0_3 = arith.constant 0 : index
    %c0_4 = arith.constant 0 : index
    %3 = vector.load %arg3[%c0_3, %c0_4] : memref<1x128xf32, #tpu.memory_space<vmem>>, vector<1x128xf32>
    %4 = vector.broadcast %3 : vector<1x128xf32> to vector<16x128xf32>
    %5 = arith.addf %2, %4 : vector<16x128xf32>
    %c0_5 = arith.constant 0 : index
    %c0_6 = arith.constant 0 : index
    %6 = vector.load %arg4[%c0_5, %c0_6] : memref<32x32xf32, #tpu.memory_space<vmem>>, vector<32x32xf32>
    %cst_7 = arith.constant dense<0.000000e+00> : vector<16x32xf32>
    %7 = tpu.matmul %0, %6, %cst_7 {dimension_numbers = #tpu.dot_dimension_numbers<[1], [0], [0], [1], [0, 0, 1, 1], [], []>} : vector<16x32xf32>, vector<32x32xf32>, vector<16x32xf32> -> vector<16x32xf32>
    %c0_8 = arith.constant 0 : index
    %c0_9 = arith.constant 0 : index
    %8 = vector.load %arg5[%c0_8, %c0_9] : memref<1x32xf32, #tpu.memory_space<vmem>>, vector<1x32xf32>
    %9 = vector.broadcast %8 : vector<1x32xf32> to vector<16x32xf32>
    %10 = arith.addf %7, %9 : vector<16x32xf32>
    %cst_10 = arith.constant 0.000000e+00 : f32
    %11 = vector.broadcast %cst_10 : f32 to vector<16x32xf32>
    %12 = arith.cmpf oge, %10, %11 : vector<16x32xf32>
    %cst_11 = arith.constant 1.000000e-01 : f32
    %13 = vector.broadcast %cst_11 : f32 to vector<16x32xf32>
    %14 = arith.mulf %13, %10 : vector<16x32xf32>
    %15 = arith.select %12, %10, %14 : vector<16x32xi1>, vector<16x32xf32>
    %c0_12 = arith.constant 0 : index
    %c0_13 = arith.constant 0 : index
    %16 = vector.load %arg6[%c0_12, %c0_13] : memref<32x64xf32, #tpu.memory_space<vmem>>, vector<32x64xf32>
    %cst_14 = arith.constant dense<0.000000e+00> : vector<16x64xf32>
    %17 = tpu.matmul %15, %16, %cst_14 {dimension_numbers = #tpu.dot_dimension_numbers<[1], [0], [0], [1], [0, 0, 1, 1], [], []>} : vector<16x32xf32>, vector<32x64xf32>, vector<16x64xf32> -> vector<16x64xf32>
    %c0_15 = arith.constant 0 : index
    %c0_16 = arith.constant 0 : index
    %18 = vector.load %arg7[%c0_15, %c0_16] : memref<1x64xf32, #tpu.memory_space<vmem>>, vector<1x64xf32>
    %19 = vector.broadcast %18 : vector<1x64xf32> to vector<16x64xf32>
    %20 = arith.addf %17, %19 : vector<16x64xf32>
    %cst_17 = arith.constant 0.000000e+00 : f32
    %21 = vector.broadcast %cst_17 : f32 to vector<16x64xf32>
    %22 = arith.cmpf oge, %20, %21 : vector<16x64xf32>
    %cst_18 = arith.constant 1.000000e-01 : f32
    %23 = vector.broadcast %cst_18 : f32 to vector<16x64xf32>
    %24 = arith.mulf %23, %20 : vector<16x64xf32>
    %25 = arith.select %22, %20, %24 : vector<16x64xi1>, vector<16x64xf32>
    %c0_19 = arith.constant 0 : index
    %c0_20 = arith.constant 0 : index
    %26 = vector.load %arg8[%c0_19, %c0_20] : memref<64x48xf32, #tpu.memory_space<vmem>>, vector<64x48xf32>
    %cst_21 = arith.constant dense<0.000000e+00> : vector<16x48xf32>
    %27 = tpu.matmul %25, %26, %cst_21 {dimension_numbers = #tpu.dot_dimension_numbers<[1], [0], [0], [1], [0, 0, 1, 1], [], []>} : vector<16x64xf32>, vector<64x48xf32>, vector<16x48xf32> -> vector<16x48xf32>
    %c0_22 = arith.constant 0 : index
    %c0_23 = arith.constant 0 : index
    %28 = vector.load %arg9[%c0_22, %c0_23] : memref<1x48xf32, #tpu.memory_space<vmem>>, vector<1x48xf32>
    %29 = vector.broadcast %28 : vector<1x48xf32> to vector<16x48xf32>
    %30 = arith.addf %27, %29 : vector<16x48xf32>
    %cst_24 = arith.constant 0.000000e+00 : f32
    %31 = vector.broadcast %cst_24 : f32 to vector<16x48xf32>
    %32 = arith.cmpf oge, %30, %31 : vector<16x48xf32>
    %cst_25 = arith.constant 1.000000e-01 : f32
    %33 = vector.broadcast %cst_25 : f32 to vector<16x48xf32>
    %34 = arith.mulf %33, %30 : vector<16x48xf32>
    %35 = arith.select %32, %30, %34 : vector<16x48xi1>, vector<16x48xf32>
    %c0_26 = arith.constant 0 : index
    %c0_27 = arith.constant 0 : index
    %36 = vector.load %arg10[%c0_26, %c0_27] : memref<48x128xf32, #tpu.memory_space<vmem>>, vector<48x128xf32>
    %cst_28 = arith.constant dense<0.000000e+00> : vector<16x128xf32>
    %37 = tpu.matmul %35, %36, %cst_28 {dimension_numbers = #tpu.dot_dimension_numbers<[1], [0], [0], [1], [0, 0, 1, 1], [], []>} : vector<16x48xf32>, vector<48x128xf32>, vector<16x128xf32> -> vector<16x128xf32>
    %c0_29 = arith.constant 0 : index
    %c0_30 = arith.constant 0 : index
    %38 = vector.load %arg11[%c0_29, %c0_30] : memref<1x128xf32, #tpu.memory_space<vmem>>, vector<1x128xf32>
    %39 = vector.broadcast %38 : vector<1x128xf32> to vector<16x128xf32>
    %40 = arith.addf %37, %39 : vector<16x128xf32>
    %cst_31 = arith.constant 0.000000e+00 : f32
    %41 = vector.broadcast %cst_31 : f32 to vector<16x128xf32>
    %42 = arith.cmpf oge, %40, %41 : vector<16x128xf32>
    %cst_32 = arith.constant 1.000000e-01 : f32
    %43 = vector.broadcast %cst_32 : f32 to vector<16x128xf32>
    %44 = arith.mulf %43, %40 : vector<16x128xf32>
    %45 = arith.select %42, %40, %44 : vector<16x128xi1>, vector<16x128xf32>
    %46 = arith.addf %45, %5 : vector<16x128xf32>
    %c0_33 = arith.constant 0 : index
    %c0_34 = arith.constant 0 : index
    %47 = vector.load %arg12[%c0_33, %c0_34] : memref<16x128xf32, #tpu.memory_space<vmem>>, vector<16x128xf32>
    tpu.vector_store %arg12[%c0_33, %c0_34], %46 {strides = array<i32>} : memref<16x128xf32, #tpu.memory_space<vmem>>, vector<16x128xf32>,
    return
  }
  func.func @transform_0(%arg0: i32) -> (i32, i32) {
    %c0_i32 = arith.constant 0 : i32
    %c0_i32_0 = arith.constant 0 : i32
    return %arg0, %c0_i32 : i32, i32
  }
  func.func @transform_1(%arg0: i32) -> (i32, i32) {
    %c0_i32 = arith.constant 0 : i32
    %c0_i32_0 = arith.constant 0 : i32
    %c0_i32_1 = arith.constant 0 : i32
    return %c0_i32, %c0_i32_0 : i32, i32
  }
  func.func @transform_2(%arg0: i32) -> (i32, i32) {
    %c0_i32 = arith.constant 0 : i32
    %c0_i32_0 = arith.constant 0 : i32
    %c0_i32_1 = arith.constant 0 : i32
    return %c0_i32, %c0_i32_0 : i32, i32
  }
  func.func @transform_3(%arg0: i32) -> (i32, i32) {
    %c0_i32 = arith.constant 0 : i32
    %c0_i32_0 = arith.constant 0 : i32
    %c0_i32_1 = arith.constant 0 : i32
    return %c0_i32, %c0_i32_0 : i32, i32
  }
  func.func @transform_4(%arg0: i32) -> (i32, i32) {
    %c0_i32 = arith.constant 0 : i32
    %c0_i32_0 = arith.constant 0 : i32
    %c0_i32_1 = arith.constant 0 : i32
    return %c0_i32, %c0_i32_0 : i32, i32
  }
  func.func @transform_5(%arg0: i32) -> (i32, i32) {
    %c0_i32 = arith.constant 0 : i32
    %c0_i32_0 = arith.constant 0 : i32
    %c0_i32_1 = arith.constant 0 : i32
    return %c0_i32, %c0_i32_0 : i32, i32
  }
  func.func @transform_6(%arg0: i32) -> (i32, i32) {
    %c0_i32 = arith.constant 0 : i32
    %c0_i32_0 = arith.constant 0 : i32
    %c0_i32_1 = arith.constant 0 : i32
    return %c0_i32, %c0_i32_0 : i32, i32
  }
  func.func @transform_7(%arg0: i32) -> (i32, i32) {
    %c0_i32 = arith.constant 0 : i32
    %c0_i32_0 = arith.constant 0 : i32
    %c0_i32_1 = arith.constant 0 : i32
    return %c0_i32, %c0_i32_0 : i32, i32
  }
  func.func @transform_8(%arg0: i32) -> (i32, i32) {
    %c0_i32 = arith.constant 0 : i32
    %c0_i32_0 = arith.constant 0 : i32
    %c0_i32_1 = arith.constant 0 : i32
    return %c0_i32, %c0_i32_0 : i32, i32
  }
  func.func @transform_9(%arg0: i32) -> (i32, i32) {
    %c0_i32 = arith.constant 0 : i32
    %c0_i32_0 = arith.constant 0 : i32
    %c0_i32_1 = arith.constant 0 : i32
    return %c0_i32, %c0_i32_0 : i32, i32
  }
  func.func @transform_10(%arg0: i32) -> (i32, i32) {
    %c0_i32 = arith.constant 0 : i32
    %c0_i32_0 = arith.constant 0 : i32
    %c0_i32_1 = arith.constant 0 : i32
    return %c0_i32, %c0_i32_0 : i32, i32
  }
  func.func @transform_11(%arg0: i32) -> (i32, i32) {
    %c0_i32 = arith.constant 0 : i32
    %c0_i32_0 = arith.constant 0 : i32
    return %arg0, %c0_i32 : i32, i32
  }
}

</mosaic_0001>

<llo_original>
// kernel: tpu_custom_call.1
$region0: #{tpu_custom_call.1}
  #allocation0 [shape = 'u32[]', space=smem, size = 0x4, offset = 0x4, fixed_abs, tag = 'smem constant byte address 0x4 - core index']
  #allocation1 [shape = 'u32[144,128]{1,0:T(1,128)}', space=vmem, size = 0x12000, scoped, tag = 'internal scratch']
  %s0 = inlined_call_operand.hbm [shape: f32[16,32], index: 0, kind: input, shape index: {}]
  %s1 = inlined_call_operand.vmem [shape: f32[32,128], index: 1, kind: input, shape index: {}]
  %s2 = inlined_call_operand.vmem [shape: f32[1,128], index: 2, kind: input, shape index: {}]
  %s3 = inlined_call_operand.vmem [shape: f32[32,32], index: 3, kind: input, shape index: {}]
  %s4 = inlined_call_operand.vmem [shape: f32[1,32], index: 4, kind: input, shape index: {}]
  %s5 = inlined_call_operand.hbm [shape: f32[32,64], index: 5, kind: input, shape index: {}]
  %s6 = inlined_call_operand.vmem [shape: f32[1,64], index: 6, kind: input, shape index: {}]
  %s7 = inlined_call_operand.vmem [shape: f32[64,48], index: 7, kind: input, shape index: {}]
  %s8 = inlined_call_operand.vmem [shape: f32[1,48], index: 8, kind: input, shape index: {}]
  %s9 = inlined_call_operand.vmem [shape: f32[48,128], index: 9, kind: input, shape index: {}]
  %s10 = inlined_call_operand.vmem [shape: f32[1,128], index: 10, kind: input, shape index: {}]
  %s11 = inlined_call_operand.hbm [shape: f32[16,128], index: 11, kind: output, shape index: {}]
  %s12 = sld [smem:[#allocation0]]
  $region62: #{tpu_custom_call.1} parent=0
    _
  %s14 = ssub.s32 1, %s12
  %s15 = scalar_select 0, %s14, %s12
  $region1: #{tpu_custom_call.1} parent=0
    #allocation2 [shape = 'u8[8192]{0}', space=vmem, size = 0x2000, scoped, tag = 'input window, operand 0, single buffered']
    #allocation3 [shape = 's32[1]{0}', space=sflag, size = 0x4, scoped, tag = 'scoped memory for tpu_custom_call.1']
    #allocation4 [shape = 's32[1]{0}', space=sflag, size = 0x4, scoped, tag = 'scoped memory for tpu_custom_call.1']
    #allocation5 [shape = 'u8[16384]{0}', space=vmem, size = 0x4000, scoped, tag = 'input window, operand 5, single buffered']
    #allocation6 [shape = 's32[1]{0}', space=sflag, size = 0x4, scoped, tag = 'scoped memory for tpu_custom_call.1']
    #allocation7 [shape = 'u8[8192]{0}', space=vmem, size = 0x2000, scoped, tag = 'output window, operand 0, single buffered']
    %16 = vsyncpa [#allocation3], 0
    %17 = vsyncpa [#allocation6], 0
    %18 = vsyncpa [#allocation4], 0
    // Predicated region
    $region2: #{tpu_custom_call.1} parent=1 // pred_check
      _
    $region3: #{tpu_custom_call.1} parent=1 // pred_check_branch
      %20 = sbr.rel (0) target = $region5
    $region4: #{tpu_custom_call.1} parent=1 // pred_region
      %s22 = ssub.s32 256, 256
      %23 = vsyncadd [#allocation3], %s22
      %s24 = sshll.u32 [#allocation2], 4
      %s25 = int_to_ptr.vmem [resolvable:$true] %s24
      %30 = dma.hbm_to_vmem [thread:$0]  %s0, 256, %s25, [#allocation3], 128, 128, 8
    $region5: #{tpu_custom_call.1} parent=1 // pred_fallthru
      _
    // Predicated region
    $region6: #{tpu_custom_call.1} parent=1 // pred_check
      _
    $region7: #{tpu_custom_call.1} parent=1 // pred_check_branch
      %32 = sbr.rel (0) target = $region9
    $region8: #{tpu_custom_call.1} parent=1 // pred_region
      _
    $region9: #{tpu_custom_call.1} parent=1 // pred_fallthru
      _
    // Predicated region
    $region10: #{tpu_custom_call.1} parent=1 // pred_check
      _
    $region11: #{tpu_custom_call.1} parent=1 // pred_check_branch
      %34 = sbr.rel (0) target = $region13
    $region12: #{tpu_custom_call.1} parent=1 // pred_region
      _
    $region13: #{tpu_custom_call.1} parent=1 // pred_fallthru
      _
    // Predicated region
    $region14: #{tpu_custom_call.1} parent=1 // pred_check
      _
    $region15: #{tpu_custom_call.1} parent=1 // pred_check_branch
      %36 = sbr.rel (0) target = $region17
    $region16: #{tpu_custom_call.1} parent=1 // pred_region
      _
    $region17: #{tpu_custom_call.1} parent=1 // pred_fallthru
      _
    // Predicated region
    $region18: #{tpu_custom_call.1} parent=1 // pred_check
      _
    $region19: #{tpu_custom_call.1} parent=1 // pred_check_branch
      %38 = sbr.rel (0) target = $region21
    $region20: #{tpu_custom_call.1} parent=1 // pred_region
      _
    $region21: #{tpu_custom_call.1} parent=1 // pred_fallthru
      _
    // Predicated region
    $region22: #{tpu_custom_call.1} parent=1 // pred_check
      _
    $region23: #{tpu_custom_call.1} parent=1 // pred_check_branch
      %40 = sbr.rel (0) target = $region25
    $region24: #{tpu_custom_call.1} parent=1 // pred_region
      %s42 = ssub.s32 512, 512
      %43 = vsyncadd [#allocation6], %s42
      %s44 = sshll.u32 [#allocation5], 4
      %s45 = int_to_ptr.vmem [resolvable:$true] %s44
      %50 = dma.hbm_to_vmem [thread:$0]  %s5, 512, %s45, [#allocation6], 128, 128, 8
    $region25: #{tpu_custom_call.1} parent=1 // pred_fallthru
      _
    // Predicated region
    $region26: #{tpu_custom_call.1} parent=1 // pred_check
      _
    $region27: #{tpu_custom_call.1} parent=1 // pred_check_branch
      %52 = sbr.rel (0) target = $region29
    $region28: #{tpu_custom_call.1} parent=1 // pred_region
      _
    $region29: #{tpu_custom_call.1} parent=1 // pred_fallthru
      _
    // Predicated region
    $region30: #{tpu_custom_call.1} parent=1 // pred_check
      _
    $region31: #{tpu_custom_call.1} parent=1 // pred_check_branch
      %54 = sbr.rel (0) target = $region33
    $region32: #{tpu_custom_call.1} parent=1 // pred_region
      _
    $region33: #{tpu_custom_call.1} parent=1 // pred_fallthru
      _
    // Predicated region
    $region34: #{tpu_custom_call.1} parent=1 // pred_check
      _
    $region35: #{tpu_custom_call.1} parent=1 // pred_check_branch
      %56 = sbr.rel (0) target = $region37
    $region36: #{tpu_custom_call.1} parent=1 // pred_region
      _
    $region37: #{tpu_custom_call.1} parent=1 // pred_fallthru
      _
    // Predicated region
    $region38: #{tpu_custom_call.1} parent=1 // pred_check
      _
    $region39: #{tpu_custom_call.1} parent=1 // pred_check_branch
      %58 = sbr.rel (0) target = $region41
    $region40: #{tpu_custom_call.1} parent=1 // pred_region
      _
    $region41: #{tpu_custom_call.1} parent=1 // pred_fallthru
      _
    // Predicated region
    $region42: #{tpu_custom_call.1} parent=1 // pred_check
      _
    $region43: #{tpu_custom_call.1} parent=1 // pred_check_branch
      %60 = sbr.rel (0) target = $region45
    $region44: #{tpu_custom_call.1} parent=1 // pred_region
      _
    $region45: #{tpu_custom_call.1} parent=1 // pred_fallthru
      _
    // Predicated region
    $region46: #{tpu_custom_call.1} parent=1 // pred_check
      _
    $region47: #{tpu_custom_call.1} parent=1 // pred_check_branch
      %62 = sbr.rel (0) target = $region49
    $region48: #{tpu_custom_call.1} parent=1 // pred_region
      %63 = dma.done [#allocation3], 256
    $region49: #{tpu_custom_call.1} parent=1 // pred_fallthru
      _
    // Predicated region
    $region50: #{tpu_custom_call.1} parent=1 // pred_check
      _
    $region51: #{tpu_custom_call.1} parent=1 // pred_check_branch
      %65 = sbr.rel (0) target = $region53
    $region52: #{tpu_custom_call.1} parent=1 // pred_region
      %66 = dma.done [#allocation6], 512
    $region53: #{tpu_custom_call.1} parent=1 // pred_fallthru
      _
    %v67 = vld [vmem:[#allocation2] sm:$0xff]
    %v68 = vld [vmem:[#allocation2 + $0x8] sm:$0xff]
    %v69 = vld [vmem:[%s1] sm:$0xff]
    %v70 = vld [vmem:[%s1 + $0x8] sm:$0xff]
    %v71 = vld [vmem:[%s1 + $0x10] sm:$0xff]
    %v72 = vld [vmem:[%s1 + $0x18] sm:$0xff]
    %v73 = vld [vmem:[%s2] sm:$0x1]
    %v75 = vlaneseq
    %v76 = vshrl.u32 %v75, 7
    %v77 = vsub.s32 0, %v76
    %v78 = vrot.slane %v73, %v77
    %vm80 = vcmask 261120
    %v82 = vsel %vm80, %v67, 0
    %v85 = vsel %vm80, %v68, 0
    %87 = vmatprep.subr.mxu0 0.0
    %88 = vmatpush1.msra.mxu0 %v69
    %89 = vmatprep.subr.mxu0 0.0
    %90 = vmatpush1.msra.mxu0 %v70
    %91 = vmatprep.subr.mxu0 0.0
    %92 = vmatpush1.msra.mxu0 %v71
    %93 = vmatprep.subr.mxu0 0.0
    %94 = vmatpush1.msra.mxu0 %v72
    %95 = vmatprep.subr.mxu0 0.0
    %96 = vmatpush1.msra.mxu0 0.0
    %97 = vmatprep.subr.mxu0 0.0
    %98 = vmatpush1.msra.mxu0 0.0
    %99 = vmatprep.subr.mxu0 0.0
    %100 = vmatpush1.msra.mxu0 0.0
    %101 = vmatprep.subr.mxu0 0.0
    %102 = vmatpush1.msra.mxu0 0.0
    %103 = vmatprep.subr.mxu0 0.0
    %104 = vmatpush1.msra.mxu0 0.0
    %105 = vmatprep.subr.mxu0 0.0
    %106 = vmatpush1.msra.mxu0 0.0
    %107 = vmatprep.subr.mxu0 0.0
    %108 = vmatpush1.msra.mxu0 0.0
    %109 = vmatprep.subr.mxu0 0.0
    %110 = vmatpush1.msra.mxu0 0.0
    %111 = vmatprep.subr.mxu0 0.0
    %112 = vmatpush1.msra.mxu0 0.0
    %113 = vmatprep.subr.mxu0 0.0
    %114 = vmatpush1.msra.mxu0 0.0
    %115 = vmatprep.subr.mxu0 0.0
    %116 = vmatpush1.msra.mxu0 0.0
    %117 = vmatprep.subr.mxu0 0.0
    %118 = vmatpush1.msra.mxu0 0.0
    %119 = vmatprep.subr.mxu0 0.0
    %120 = vmatpush1.msra.mxu0 0.0
    %121 = vmatprep.subr.mxu0 0.0
    %122 = vmatpush1.msra.mxu0 0.0
    %123 = vmatprep.subr.mxu0 0.0
    %124 = vmatpush1.msra.mxu0 0.0
    %125 = vmatprep.subr.mxu0 0.0
    %126 = vmatpush1.msra.mxu0 0.0
    %127 = vmatprep.subr.mxu0 0.0
    %128 = vmatpush1.msra.mxu0 0.0
    %129 = vmatprep.subr.mxu0 0.0
    %130 = vmatpush1.msra.mxu0 0.0
    %131 = vmatprep.subr.mxu0 0.0
    %132 = vmatpush1.msra.mxu0 0.0
    %133 = vmatprep.subr.mxu0 0.0
    %134 = vmatpush1.msra.mxu0 0.0
    %135 = vmatprep.subr.mxu0 0.0
    %136 = vmatpush1.msra.mxu0 0.0
    %137 = vmatprep.subr.mxu0 0.0
    %138 = vmatpush1.msra.mxu0 0.0
    %139 = vmatprep.subr.mxu0 0.0
    %140 = vmatpush1.msra.mxu0 0.0
    %141 = vmatprep.subr.mxu0 0.0
    %142 = vmatpush1.msra.mxu0 0.0
    %143 = vmatprep.subr.mxu0 0.0
    %144 = vmatpush1.msra.mxu0 0.0
    %145 = vmatprep.subr.mxu0 0.0
    %146 = vmatpush1.msra.mxu0 0.0
    %147 = vmatprep.subr.mxu0 0.0
    %148 = vmatpush1.msra.mxu0 0.0
    %149 = vmatprep.subr.mxu0 0.0
    %150 = vmatpush1.msra.mxu0 0.0
    %151 = vmatprep.mubr.f32.mxu0 0.0
    %152 = vmatmul.mubr.f32.gmra.mrb[0].mxu0 %v82
    %v153 = vpop.f32.mrb[0].mxu0
    %v154 = vadd.f32 %v78, %v153
    %v155 = vpop.f32.mrb[0].mxu0
    %156 = vmatprep.mubr.f32.mxu0 0.0
    %157 = vmatmul.mubr.f32.gmra.mrb[0].mxu0 %v85
    %v158 = vpop.f32.mrb[0].mxu0
    %v159 = vadd.f32 %v78, %v158
    %v160 = vpop.f32.mrb[0].mxu0
    %161 = vdwg.mxu0
    %v162 = vld [vmem:[%s3] sm:$0xff]
    %v163 = vld [vmem:[%s3 + $0x8] sm:$0xff]
    %v164 = vld [vmem:[%s3 + $0x10] sm:$0xff]
    %v165 = vld [vmem:[%s3 + $0x18] sm:$0xff]
    %v166 = vld [vmem:[%s4] sm:$0x1]
    %v168 = vlaneseq
    %v169 = vshrl.u32 %v168, 7
    %v170 = vsub.s32 0, %v169
    %v171 = vrot.slane %v166, %v170
    %173 = vmatprep.subr.mxu0 0.0
    %174 = vmatpush1.msra.mxu0 %v162
    %175 = vmatprep.subr.mxu0 0.0
    %176 = vmatpush1.msra.mxu0 %v163
    %177 = vmatprep.subr.mxu0 0.0
    %178 = vmatpush1.msra.mxu0 %v164
    %179 = vmatprep.subr.mxu0 0.0
    %180 = vmatpush1.msra.mxu0 %v165
    %181 = vmatprep.subr.mxu0 0.0
    %182 = vmatpush1.msra.mxu0 0.0
    %183 = vmatprep.subr.mxu0 0.0
    %184 = vmatpush1.msra.mxu0 0.0
    %185 = vmatprep.subr.mxu0 0.0
    %186 = vmatpush1.msra.mxu0 0.0
    %187 = vmatprep.subr.mxu0 0.0
    %188 = vmatpush1.msra.mxu0 0.0
    %189 = vmatprep.subr.mxu0 0.0
    %190 = vmatpush1.msra.mxu0 0.0
    %191 = vmatprep.subr.mxu0 0.0
    %192 = vmatpush1.msra.mxu0 0.0
    %193 = vmatprep.subr.mxu0 0.0
    %194 = vmatpush1.msra.mxu0 0.0
    %195 = vmatprep.subr.mxu0 0.0
    %196 = vmatpush1.msra.mxu0 0.0
    %197 = vmatprep.subr.mxu0 0.0
    %198 = vmatpush1.msra.mxu0 0.0
    %199 = vmatprep.subr.mxu0 0.0
    %200 = vmatpush1.msra.mxu0 0.0
    %201 = vmatprep.subr.mxu0 0.0
    %202 = vmatpush1.msra.mxu0 0.0
    %203 = vmatprep.subr.mxu0 0.0
    %204 = vmatpush1.msra.mxu0 0.0
    %205 = vmatprep.subr.mxu0 0.0
    %206 = vmatpush1.msra.mxu0 0.0
    %207 = vmatprep.subr.mxu0 0.0
    %208 = vmatpush1.msra.mxu0 0.0
    %209 = vmatprep.subr.mxu0 0.0
    %210 = vmatpush1.msra.mxu0 0.0
    %211 = vmatprep.subr.mxu0 0.0
    %212 = vmatpush1.msra.mxu0 0.0
    %213 = vmatprep.subr.mxu0 0.0
    %214 = vmatpush1.msra.mxu0 0.0
    %215 = vmatprep.subr.mxu0 0.0
    %216 = vmatpush1.msra.mxu0 0.0
    %217 = vmatprep.subr.mxu0 0.0
    %218 = vmatpush1.msra.mxu0 0.0
    %219 = vmatprep.subr.mxu0 0.0
    %220 = vmatpush1.msra.mxu0 0.0
    %221 = vmatprep.subr.mxu0 0.0
    %222 = vmatpush1.msra.mxu0 0.0
    %223 = vmatprep.subr.mxu0 0.0
    %224 = vmatpush1.msra.mxu0 0.0
    %225 = vmatprep.subr.mxu0 0.0
    %226 = vmatpush1.msra.mxu0 0.0
    %227 = vmatprep.subr.mxu0 0.0
    %228 = vmatpush1.msra.mxu0 0.0
    %229 = vmatprep.subr.mxu0 0.0
    %230 = vmatpush1.msra.mxu0 0.0
    %231 = vmatprep.subr.mxu0 0.0
    %232 = vmatpush1.msra.mxu0 0.0
    %233 = vmatprep.subr.mxu0 0.0
    %234 = vmatpush1.msra.mxu0 0.0
    %235 = vmatprep.subr.mxu0 0.0
    %236 = vmatpush1.msra.mxu0 0.0
    %237 = vmatprep.mubr.f32.mxu0 0.0
    %238 = vmatmul.mubr.f32.gmra.mrb[0].mxu0 %v82
    %v239 = vpop.f32.mrb[0].mxu0
    %v240 = vadd.f32 %v171, %v239
    %v241 = vpop.f32.mrb[0].mxu0
    %242 = vmatprep.mubr.f32.mxu0 0.0
    %243 = vmatmul.mubr.f32.gmra.mrb[0].mxu0 %v85
    %v244 = vpop.f32.mrb[0].mxu0
    %v245 = vadd.f32 %v171, %v244
    %v246 = vpop.f32.mrb[0].mxu0
    %247 = vdwg.mxu0
    %vm248 = vcmp.ge.f32.partialorder %v240, 0.0
    %vm249 = vcmp.ge.f32.partialorder %v245, 0.0
    %v250 = vmul.f32 %v240, 0.1
    %v251 = vmul.f32 %v245, 0.1
    %v252 = vsel %vm248, %v240, %v250
    %v253 = vsel %vm249, %v245, %v251
    %v254 = vld [vmem:[#allocation5] sm:$0xff]
    %v255 = vld [vmem:[#allocation5 + $0x8] sm:$0xff]
    %v256 = vld [vmem:[#allocation5 + $0x10] sm:$0xff]
    %v257 = vld [vmem:[#allocation5 + $0x18] sm:$0xff]
    %v258 = vld [vmem:[%s6] sm:$0x1]
    %v260 = vlaneseq
    %v261 = vshrl.u32 %v260, 7
    %v262 = vsub.s32 0, %v261
    %v263 = vrot.slane %v258, %v262
    %v266 = vsel %vm80, %v252, 0
    %v269 = vsel %vm80, %v253, 0
    %271 = vmatprep.subr.mxu0 0.0
    %272 = vmatpush1.msra.mxu0 %v254
    %273 = vmatprep.subr.mxu0 0.0
    %274 = vmatpush1.msra.mxu0 %v255
    %275 = vmatprep.subr.mxu0 0.0
    %276 = vmatpush1.msra.mxu0 %v256
    %277 = vmatprep.subr.mxu0 0.0
    %278 = vmatpush1.msra.mxu0 %v257
    %279 = vmatprep.subr.mxu0 0.0
    %280 = vmatpush1.msra.mxu0 0.0
    %281 = vmatprep.subr.mxu0 0.0
    %282 = vmatpush1.msra.mxu0 0.0
    %283 = vmatprep.subr.mxu0 0.0
    %284 = vmatpush1.msra.mxu0 0.0
    %285 = vmatprep.subr.mxu0 0.0
    %286 = vmatpush1.msra.mxu0 0.0
    %287 = vmatprep.subr.mxu0 0.0
    %288 = vmatpush1.msra.mxu0 0.0
    %289 = vmatprep.subr.mxu0 0.0
    %290 = vmatpush1.msra.mxu0 0.0
    %291 = vmatprep.subr.mxu0 0.0
    %292 = vmatpush1.msra.mxu0 0.0
    %293 = vmatprep.subr.mxu0 0.0
    %294 = vmatpush1.msra.mxu0 0.0
    %295 = vmatprep.subr.mxu0 0.0
    %296 = vmatpush1.msra.mxu0 0.0
    %297 = vmatprep.subr.mxu0 0.0
    %298 = vmatpush1.msra.mxu0 0.0
    %299 = vmatprep.subr.mxu0 0.0
    %300 = vmatpush1.msra.mxu0 0.0
    %301 = vmatprep.subr.mxu0 0.0
    %302 = vmatpush1.msra.mxu0 0.0
    %303 = vmatprep.subr.mxu0 0.0
    %304 = vmatpush1.msra.mxu0 0.0
    %305 = vmatprep.subr.mxu0 0.0
    %306 = vmatpush1.msra.mxu0 0.0
    %307 = vmatprep.subr.mxu0 0.0
    %308 = vmatpush1.msra.mxu0 0.0
    %309 = vmatprep.subr.mxu0 0.0
    %310 = vmatpush1.msra.mxu0 0.0
    %311 = vmatprep.subr.mxu0 0.0
    %312 = vmatpush1.msra.mxu0 0.0
    %313 = vmatprep.subr.mxu0 0.0
    %314 = vmatpush1.msra.mxu0 0.0
    %315 = vmatprep.subr.mxu0 0.0
    %316 = vmatpush1.msra.mxu0 0.0
    %317 = vmatprep.subr.mxu0 0.0
    %318 = vmatpush1.msra.mxu0 0.0
    %319 = vmatprep.subr.mxu0 0.0
    %320 = vmatpush1.msra.mxu0 0.0
    %321 = vmatprep.subr.mxu0 0.0
    %322 = vmatpush1.msra.mxu0 0.0
    %323 = vmatprep.subr.mxu0 0.0
    %324 = vmatpush1.msra.mxu0 0.0
    %325 = vmatprep.subr.mxu0 0.0
    %326 = vmatpush1.msra.mxu0 0.0
    %327 = vmatprep.subr.mxu0 0.0
    %328 = vmatpush1.msra.mxu0 0.0
    %329 = vmatprep.subr.mxu0 0.0
    %330 = vmatpush1.msra.mxu0 0.0
    %331 = vmatprep.subr.mxu0 0.0
    %332 = vmatpush1.msra.mxu0 0.0
    %333 = vmatprep.subr.mxu0 0.0
    %334 = vmatpush1.msra.mxu0 0.0
    %335 = vmatprep.mubr.f32.mxu0 0.0
    %336 = vmatmul.mubr.f32.gmra.mrb[0].mxu0 %v266
    %v337 = vpop.f32.mrb[0].mxu0
    %v338 = vadd.f32 %v263, %v337
    %v339 = vpop.f32.mrb[0].mxu0
    %340 = vmatprep.mubr.f32.mxu0 0.0
    %341 = vmatmul.mubr.f32.gmra.mrb[0].mxu0 %v269
    %v342 = vpop.f32.mrb[0].mxu0
    %v343 = vadd.f32 %v263, %v342
    %v344 = vpop.f32.mrb[0].mxu0
    %345 = vdwg.mxu0
    %vm346 = vcmp.ge.f32.partialorder %v338, 0.0
    %vm347 = vcmp.ge.f32.partialorder %v343, 0.0
    %v348 = vmul.f32 %v338, 0.1
    %v349 = vmul.f32 %v343, 0.1
    %v350 = vsel %vm346, %v338, %v348
    %v351 = vsel %vm347, %v343, %v349
    %v352 = vld [vmem:[%s7] sm:$0xff]
    %v353 = vld [vmem:[%s7 + $0x8] sm:$0xff]
    %v354 = vld [vmem:[%s7 + $0x10] sm:$0xff]
    %v355 = vld [vmem:[%s7 + $0x18] sm:$0xff]
    %v356 = vld [vmem:[%s7 + $0x20] sm:$0xff]
    %v357 = vld [vmem:[%s7 + $0x28] sm:$0xff]
    %v358 = vld [vmem:[%s7 + $0x30] sm:$0xff]
    %v359 = vld [vmem:[%s7 + $0x38] sm:$0xff]
    %v360 = vld [vmem:[%s8] sm:$0x1]
    %v362 = vlaneseq
    %v363 = vshrl.u32 %v362, 7
    %v364 = vsub.s32 0, %v363
    %v365 = vrot.slane %v360, %v364
    %vm367 = vcmask 523264
    %v369 = vsel %vm367, %v350, 0
    %v372 = vsel %vm367, %v351, 0
    %374 = vmatprep.subr.mxu0 0.0
    %375 = vmatpush1.msra.mxu0 %v352
    %376 = vmatprep.subr.mxu0 0.0
    %377 = vmatpush1.msra.mxu0 %v353
    %378 = vmatprep.subr.mxu0 0.0
    %379 = vmatpush1.msra.mxu0 %v354
    %380 = vmatprep.subr.mxu0 0.0
    %381 = vmatpush1.msra.mxu0 %v355
    %382 = vmatprep.subr.mxu0 0.0
    %383 = vmatpush1.msra.mxu0 %v356
    %384 = vmatprep.subr.mxu0 0.0
    %385 = vmatpush1.msra.mxu0 %v357
    %386 = vmatprep.subr.mxu0 0.0
    %387 = vmatpush1.msra.mxu0 %v358
    %388 = vmatprep.subr.mxu0 0.0
    %389 = vmatpush1.msra.mxu0 %v359
    %390 = vmatprep.subr.mxu0 0.0
    %391 = vmatpush1.msra.mxu0 0.0
    %392 = vmatprep.subr.mxu0 0.0
    %393 = vmatpush1.msra.mxu0 0.0
    %394 = vmatprep.subr.mxu0 0.0
    %395 = vmatpush1.msra.mxu0 0.0
    %396 = vmatprep.subr.mxu0 0.0
    %397 = vmatpush1.msra.mxu0 0.0
    %398 = vmatprep.subr.mxu0 0.0
    %399 = vmatpush1.msra.mxu0 0.0
    %400 = vmatprep.subr.mxu0 0.0
    %401 = vmatpush1.msra.mxu0 0.0
    %402 = vmatprep.subr.mxu0 0.0
    %403 = vmatpush1.msra.mxu0 0.0
    %404 = vmatprep.subr.mxu0 0.0
    %405 = vmatpush1.msra.mxu0 0.0
    %406 = vmatprep.subr.mxu0 0.0
    %407 = vmatpush1.msra.mxu0 0.0
    %408 = vmatprep.subr.mxu0 0.0
    %409 = vmatpush1.msra.mxu0 0.0
    %410 = vmatprep.subr.mxu0 0.0
    %411 = vmatpush1.msra.mxu0 0.0
    %412 = vmatprep.subr.mxu0 0.0
    %413 = vmatpush1.msra.mxu0 0.0
    %414 = vmatprep.subr.mxu0 0.0
    %415 = vmatpush1.msra.mxu0 0.0
    %416 = vmatprep.subr.mxu0 0.0
    %417 = vmatpush1.msra.mxu0 0.0
    %418 = vmatprep.subr.mxu0 0.0
    %419 = vmatpush1.msra.mxu0 0.0
    %420 = vmatprep.subr.mxu0 0.0
    %421 = vmatpush1.msra.mxu0 0.0
    %422 = vmatprep.subr.mxu0 0.0
    %423 = vmatpush1.msra.mxu0 0.0
    %424 = vmatprep.subr.mxu0 0.0
    %425 = vmatpush1.msra.mxu0 0.0
    %426 = vmatprep.subr.mxu0 0.0
    %427 = vmatpush1.msra.mxu0 0.0
    %428 = vmatprep.subr.mxu0 0.0
    %429 = vmatpush1.msra.mxu0 0.0
    %430 = vmatprep.subr.mxu0 0.0
    %431 = vmatpush1.msra.mxu0 0.0
    %432 = vmatprep.subr.mxu0 0.0
    %433 = vmatpush1.msra.mxu0 0.0
    %434 = vmatprep.subr.mxu0 0.0
    %435 = vmatpush1.msra.mxu0 0.0
    %436 = vmatprep.subr.mxu0 0.0
    %437 = vmatpush1.msra.mxu0 0.0
    %438 = vmatprep.mubr.f32.mxu0 0.0
    %439 = vmatmul.mubr.f32.gmra.mrb[0].mxu0 %v369
    %v440 = vpop.f32.mrb[0].mxu0
    %v441 = vadd.f32 %v365, %v440
    %v442 = vpop.f32.mrb[0].mxu0
    %443 = vmatprep.mubr.f32.mxu0 0.0
    %444 = vmatmul.mubr.f32.gmra.mrb[0].mxu0 %v372
    %v445 = vpop.f32.mrb[0].mxu0
    %v446 = vadd.f32 %v365, %v445
    %v447 = vpop.f32.mrb[0].mxu0
    %448 = vdwg.mxu0
    %vm449 = vcmp.ge.f32.partialorder %v441, 0.0
    %vm450 = vcmp.ge.f32.partialorder %v446, 0.0
    %v451 = vmul.f32 %v441, 0.1
    %v452 = vmul.f32 %v446, 0.1
    %v453 = vsel %vm449, %v441, %v451
    %v454 = vsel %vm450, %v446, %v452
    %v455 = vld [vmem:[%s9] sm:$0xff]
    %v456 = vld [vmem:[%s9 + $0x8] sm:$0xff]
    %v457 = vld [vmem:[%s9 + $0x10] sm:$0xff]
    %v458 = vld [vmem:[%s9 + $0x18] sm:$0xff]
    %v459 = vld [vmem:[%s9 + $0x20] sm:$0xff]
    %v460 = vld [vmem:[%s9 + $0x28] sm:$0xff]
    %v461 = vld [vmem:[%s10] sm:$0x1]
    %v463 = vlaneseq
    %v464 = vshrl.u32 %v463, 7
    %v465 = vsub.s32 0, %v464
    %v466 = vrot.slane %v461, %v465
    %vm468 = vcmask 392192
    %v470 = vsel %vm468, %v453, 0
    %v473 = vsel %vm468, %v454, 0
    %475 = vmatprep.subr.mxu0 0.0
    %476 = vmatpush1.msra.mxu0 %v455
    %477 = vmatprep.subr.mxu0 0.0
    %478 = vmatpush1.msra.mxu0 %v456
    %479 = vmatprep.subr.mxu0 0.0
    %480 = vmatpush1.msra.mxu0 %v457
    %481 = vmatprep.subr.mxu0 0.0
    %482 = vmatpush1.msra.mxu0 %v458
    %483 = vmatprep.subr.mxu0 0.0
    %484 = vmatpush1.msra.mxu0 %v459
    %485 = vmatprep.subr.mxu0 0.0
    %486 = vmatpush1.msra.mxu0 %v460
    %487 = vmatprep.subr.mxu0 0.0
    %488 = vmatpush1.msra.mxu0 0.0
    %489 = vmatprep.subr.mxu0 0.0
    %490 = vmatpush1.msra.mxu0 0.0
    %491 = vmatprep.subr.mxu0 0.0
    %492 = vmatpush1.msra.mxu0 0.0
    %493 = vmatprep.subr.mxu0 0.0
    %494 = vmatpush1.msra.mxu0 0.0
    %495 = vmatprep.subr.mxu0 0.0
    %496 = vmatpush1.msra.mxu0 0.0
    %497 = vmatprep.subr.mxu0 0.0
    %498 = vmatpush1.msra.mxu0 0.0
    %499 = vmatprep.subr.mxu0 0.0
    %500 = vmatpush1.msra.mxu0 0.0
    %501 = vmatprep.subr.mxu0 0.0
    %502 = vmatpush1.msra.mxu0 0.0
    %503 = vmatprep.subr.mxu0 0.0
    %504 = vmatpush1.msra.mxu0 0.0
    %505 = vmatprep.subr.mxu0 0.0
    %506 = vmatpush1.msra.mxu0 0.0
    %507 = vmatprep.subr.mxu0 0.0
    %508 = vmatpush1.msra.mxu0 0.0
    %509 = vmatprep.subr.mxu0 0.0
    %510 = vmatpush1.msra.mxu0 0.0
    %511 = vmatprep.subr.mxu0 0.0
    %512 = vmatpush1.msra.mxu0 0.0
    %513 = vmatprep.subr.mxu0 0.0
    %514 = vmatpush1.msra.mxu0 0.0
    %515 = vmatprep.subr.mxu0 0.0
    %516 = vmatpush1.msra.mxu0 0.0
    %517 = vmatprep.subr.mxu0 0.0
    %518 = vmatpush1.msra.mxu0 0.0
    %519 = vmatprep.subr.mxu0 0.0
    %520 = vmatpush1.msra.mxu0 0.0
    %521 = vmatprep.subr.mxu0 0.0
    %522 = vmatpush1.msra.mxu0 0.0
    %523 = vmatprep.subr.mxu0 0.0
    %524 = vmatpush1.msra.mxu0 0.0
    %525 = vmatprep.subr.mxu0 0.0
    %526 = vmatpush1.msra.mxu0 0.0
    %527 = vmatprep.subr.mxu0 0.0
    %528 = vmatpush1.msra.mxu0 0.0
    %529 = vmatprep.subr.mxu0 0.0
    %530 = vmatpush1.msra.mxu0 0.0
    %531 = vmatprep.subr.mxu0 0.0
    %532 = vmatpush1.msra.mxu0 0.0
    %533 = vmatprep.subr.mxu0 0.0
    %534 = vmatpush1.msra.mxu0 0.0
    %535 = vmatprep.subr.mxu0 0.0
    %536 = vmatpush1.msra.mxu0 0.0
    %537 = vmatprep.subr.mxu0 0.0
    %538 = vmatpush1.msra.mxu0 0.0
    %539 = vmatprep.mubr.f32.mxu0 0.0
    %540 = vmatmul.mubr.f32.gmra.mrb[0].mxu0 %v470
    %v541 = vpop.f32.mrb[0].mxu0
    %v542 = vadd.f32 %v466, %v541
    %v543 = vpop.f32.mrb[0].mxu0
    %544 = vmatprep.mubr.f32.mxu0 0.0
    %545 = vmatmul.mubr.f32.gmra.mrb[0].mxu0 %v473
    %v546 = vpop.f32.mrb[0].mxu0
    %v547 = vadd.f32 %v466, %v546
    %v548 = vpop.f32.mrb[0].mxu0
    %549 = vdwg.mxu0
    %vm550 = vcmp.ge.f32.partialorder %v542, 0.0
    %vm551 = vcmp.ge.f32.partialorder %v547, 0.0
    %v552 = vmul.f32 %v542, 0.1
    %v553 = vmul.f32 %v547, 0.1
    %v554 = vsel %vm550, %v542, %v552
    %v555 = vsel %vm551, %v547, %v553
    %v556 = vadd.f32 %v554, %v154
    %v557 = vadd.f32 %v555, %v159
    %558 = vst [vmem:[#allocation7] sm:$0xff] %v556
    %559 = vst [vmem:[#allocation7 + $0x8] sm:$0xff] %v557
    // Predicated region
    $region54: #{tpu_custom_call.1} parent=1 // pred_check
      _
    $region55: #{tpu_custom_call.1} parent=1 // pred_check_branch
      %561 = sbr.rel (0) target = $region57
    $region56: #{tpu_custom_call.1} parent=1 // pred_region
      %s563 = ssub.s32 256, 256
      %564 = vsyncadd [#allocation4], %s563
      %s565 = sshll.u32 [#allocation7], 4
      %s566 = int_to_ptr.vmem [resolvable:$true] %s565
      %571 = dma.vmem_to_hbm [thread:$0]  %s566, 256, %s11, [#allocation4], 128, 128, 8
    $region57: #{tpu_custom_call.1} parent=1 // pred_fallthru
      _
    // Predicated region
    $region58: #{tpu_custom_call.1} parent=1 // pred_check
      _
    $region59: #{tpu_custom_call.1} parent=1 // pred_check_branch
      %573 = sbr.rel (0) target = $region61
    $region60: #{tpu_custom_call.1} parent=1 // pred_region
      %574 = dma.done [#allocation4], 256
    $region61: #{tpu_custom_call.1} parent=1 // pred_fallthru
      _
    %575 = vsyncpa [#allocation3], 1
    %576 = vsyncpa [#allocation6], 1
    %577 = vsyncpa [#allocation4], 1

</llo_original>
